<compile_context>
chip_gen: v6e
topology: v6e:2x2x1
jax: 0.10.0
libtpu: 0.0.40
codegen_flags: <defaults>
</compile_context>

<pallas_src>
import jax
import jax.numpy as jnp
from jax.experimental import pallas as pl
from jax.experimental.pallas import tpu as pltpu

NEG_SLOPE = 0.1          # F.leaky_relu(negative_slope=0.1)
GN_EPS = 1e-5            # GraphNorm eps
W_DTYPE = jnp.bfloat16   # matmul-operand dtype (accumulation stays f32)


def gcn1_kernel(feat_ref, w_conv_ref, vecs_ref, w_lin_ref, b_lin_ref, out_ref):
    """Processes a block of G_BLK graphs per grid step, everything in VMEM.

    feat_ref : [G_BLK, N, F]  node features (f32)
    w_conv   : [L, 2F, F]     fused GraphConv weights, rows [0:F] = lin_rel,
                              rows [F:2F] = lin_root (x @ W layout), bf16
    vecs     : [L, 8, F]      packed per-layer rows: 0=b_rel 1=gn_w 2=gn_b
                              3=gn_ms, rows 4..7 zero pad (f32)
    w_lin    : [F, O] bf16,   b_lin : [1, O] f32
    out_ref  : [G_BLK, O]
    """
    g_blk, n_nodes, n_feat = feat_ref.shape
    m = g_blk * n_nodes
    x0 = feat_ref[...].reshape(m, n_feat)

    # Hoisted wrap-around mask: row g*N is the first node of graph g; it has no
    # in-edge on the path graph, so its aggregated neighbour sum is 0.  The mask
    # also kills the cross-graph leak introduced by rolling the flattened block.
    row_ids = jax.lax.broadcasted_iota(jnp.int32, (m, 1), 0)
    first_node = (row_ids % n_nodes) == 0            # [M, 1], broadcast over lanes

    def conv_norm(x, i):
        # Path-graph 'add' aggregation on the flattened [M, F] block:
        # node r receives x[r-1]; first node of every graph receives 0.
        shifted = pltpu.roll(x, shift=1, axis=0)
        agg = jnp.where(first_node, 0.0, shifted)
        # Fused rel+root matmul on the MXU: [M, 2F] @ [2F, F], f32 accumulation.
        # (Per perf review: switch to two summed dots only if a bundle dump
        # shows this lane concat materialising relayout copies.)
        xin = jnp.concatenate([agg, x], axis=-1)
        h = jnp.dot(xin.astype(W_DTYPE), w_conv_ref[i],
                    preferred_element_type=jnp.float32)
        v = vecs_ref[i]                              # [8, F] packed vectors
        h = h + v[0:1, :]                            # b_rel
        # GraphNorm: statistics over the node axis of each graph.
        # TODO(synk): PyG GraphNorm applied literally to a [1, N, F] tensor
        #             would normalise over the singleton dim 0 (degenerate
        #             output == bias); we implement the intended per-graph
        #             (node-axis) semantics instead.
        hg = h.reshape(g_blk, n_nodes, n_feat)
        mean = jnp.mean(hg, axis=1, keepdims=True)
        cent = hg - mean * v[3:4, :]                 # mean_scale
        var = jnp.mean(cent * cent, axis=1, keepdims=True)
        scale = v[1:2, :] * jax.lax.rsqrt(var + GN_EPS)   # gn_w folded into scale
        return (cent * scale + v[2:3, :]).reshape(m, n_feat)

    # first 3 blocks: conv -> norm -> leaky_relu(0.1)
    x = x0
    for i in range(3):
        x = conv_norm(x, i)
        x = jnp.where(x > 0, x, NEG_SLOPE * x)

    # last block: conv -> norm, residual with the original input, relu
    x = x0 + conv_norm(x, 3)
    x = jnp.maximum(x, 0.0)

    # global_mean_pool per graph, then one batched final linear + stable softplus
    pooled = jnp.mean(x.reshape(g_blk, n_nodes, n_feat), axis=1)     # [G_BLK, F]
    logits = jnp.dot(pooled.astype(W_DTYPE), w_lin_ref[...],
                     preferred_element_type=jnp.float32) + b_lin_ref[...]
    out_ref[...] = jnp.maximum(logits, 0.0) + jnp.log1p(jnp.exp(-jnp.abs(logits)))


def init_params(key, hidden_feats, out_feats):
    """Deterministic synthetic parameters matching GCN1.__init__ shapes, packed.

    GraphConv(in, out): lin_rel W[in,out] + b[out], lin_root W[in,out] (no bias)
    GraphNorm(out): weight=1, bias=0, mean_scale=1 (PyG defaults)
    Linear(hidden_feats[0], out_feats)
    """
    f = hidden_feats[0]
    assert all(h == f for h in hidden_feats)   # stacked-weight kernel: equal sizes
    n_layers = len(hidden_feats)               # 3 conv/norm blocks + 1 final block
    k0, k1, k2, k3 = jax.random.split(key, 4)
    scale = 1.0 / jnp.sqrt(jnp.float32(f))
    w_rel = jax.random.normal(k0, (n_layers, f, f), jnp.float32) * scale
    w_root = jax.random.normal(k1, (n_layers, f, f), jnp.float32) * scale
    w_conv = jnp.concatenate([w_rel, w_root], axis=1).astype(W_DTYPE)  # [L, 2F, F]

    vecs = jnp.zeros((n_layers, 8, f), jnp.float32)
    vecs = vecs.at[:, 1, :].set(1.0)   # gn_w
    vecs = vecs.at[:, 3, :].set(1.0)   # gn_ms
    # row 0 = b_rel (zeros), row 2 = gn_b (zeros), rows 4..7 = pad

    return {
        "w_conv": w_conv,
        "vecs": vecs,
        "w_lin": (jax.random.normal(k2, (f, out_feats), jnp.float32)
                  * scale).astype(W_DTYPE),
        "b_lin": jax.random.normal(k3, (1, out_feats), jnp.float32) * scale,
    }


def _default_graphs_per_block(g, n):
    """Pick G_BLK so M = G_BLK*N ≈ 256 (v6e/v7x MXU pass; >=128 suffices on
    v5e), keeping >=2 parallel grid steps when the batch allows it (v7x TCs)."""
    target = max(1, 256 // n)
    if g <= target:
        return g                       # single step; nothing worth sharding
    if g <= 2 * target:
        return -(-g // 2)              # two roughly equal parallel steps
    return target


def gcn1_forward_batched(feat, params, graphs_per_block=None):
    """feat: [G, N, F] (G independent path graphs)  ->  [G, out_feats]."""
    g, n, f = feat.shape
    out_feats = params["b_lin"].shape[-1]
    g_blk = graphs_per_block or _default_graphs_per_block(g, n)
    g_blk = max(1, min(g_blk, g))
    num_blocks = pl.cdiv(g, g_blk)
    g_pad = num_blocks * g_blk
    if g_pad != g:                     # pad with zero graphs; sliced off below
        feat = jnp.pad(feat, ((0, g_pad - g), (0, 0), (0, 0)))

    out = pl.pallas_call(
        gcn1_kernel,
        out_shape=jax.ShapeDtypeStruct((g_pad, out_feats), jnp.float32),
        grid=(num_blocks,),
        in_specs=[
            pl.BlockSpec((g_blk, n, f), lambda i: (i, 0, 0)),             # per block
            pl.BlockSpec(params["w_conv"].shape, lambda i: (0, 0, 0)),    # resident
            pl.BlockSpec(params["vecs"].shape, lambda i: (0, 0, 0)),      # resident
            pl.BlockSpec(params["w_lin"].shape, lambda i: (0, 0)),        # resident
            pl.BlockSpec(params["b_lin"].shape, lambda i: (0, 0)),        # resident
        ],
        out_specs=pl.BlockSpec((g_blk, out_feats), lambda i: (i, 0)),
        compiler_params=pltpu.CompilerParams(
            dimension_semantics=("parallel",)),
    )(feat, params["w_conv"], params["vecs"], params["w_lin"], params["b_lin"])
    return out[:g]


def gcn1_forward(feat, params):
    """Module-faithful entry: feat [1, N, F0] -> [out_feats] (squeeze + softplus)."""
    assert feat.shape[0] == 1, "the PyTorch module processes a single graph"
    return gcn1_forward_batched(feat, params)[0]


if __name__ == "__main__":
    key = jax.random.PRNGKey(0)
    k_feat, k_params, k_batch = jax.random.split(key, 3)

    hidden_feats = [32, 32, 32, 32]   # 4 GraphConv/GraphNorm layers total
    out_feats = 8
    num_nodes = 16

    params = init_params(k_params, hidden_feats, out_feats)

    # canonical single-graph forward (matches the module's [1, N, F] input)
    feat = jax.random.normal(k_feat, (1, num_nodes, hidden_feats[0]), jnp.float32)
    out = jax.jit(gcn1_forward)(feat, params)
    out = jax.block_until_ready(out)
    assert out.shape == (out_feats,)
    assert bool(jnp.all(jnp.isfinite(out)))
    assert bool(jnp.all(out >= 0.0))           # softplus output is non-negative

    # batched path: 32 graphs -> 2 parallel grid steps of 16 graphs each
    # (M = 256 conv matmuls, batched pooled linear, v7x megacore sharding).
    feat_b = jax.random.normal(k_batch, (32, num_nodes, hidden_feats[0]),
                               jnp.float32)
    out_b = jax.jit(gcn1_forward_batched)(feat_b, params)
    out_b = jax.block_until_ready(out_b)
    assert out_b.shape == (32, out_feats)
    assert bool(jnp.all(jnp.isfinite(out_b)))
    assert bool(jnp.all(out_b >= 0.0))

    # graph-batching consistency: graph 0 of the batched path must match the
    # single-graph path run on the same features (block-size independence).
    out_single0 = jax.jit(gcn1_forward)(feat_b[:1], params)
    out_single0 = jax.block_until_ready(out_single0)
    assert bool(jnp.allclose(out_b[0], out_single0, rtol=2e-2, atol=2e-2))

    print("KERNEL_OK")
</pallas_src>

<mosaic_0001>
module attributes {stable_mosaic.version = 11 : i64} {
  func.func @gcn1_kernel(%arg0: i32, %arg1: memref<1x16x32xf32, #tpu.memory_space<vmem>>, %arg2: memref<4x64x32xbf16, #tpu.memory_space<vmem>>, %arg3: memref<4x8x32xf32, #tpu.memory_space<vmem>>, %arg4: memref<32x8xbf16, #tpu.memory_space<vmem>>, %arg5: memref<1x8xf32, #tpu.memory_space<vmem>>, %arg6: memref<1x8xf32, #tpu.memory_space<vmem>>) attributes {dimension_semantics = [#tpu.dimension_semantics<parallel>], iteration_bounds = array<i64: 1>, scalar_prefetch = 0 : i64, scratch_operands = 0 : i64, tpu.core_type = #tpu.core_type<tc>, window_params = [{transform_indices = @transform_0, window_bounds = array<i64: 1, 16, 32>}, {pipeline_mode = #tpu.pipeline_mode<synchronous>, transform_indices = @transform_1, window_bounds = array<i64: 4, 64, 32>}, {pipeline_mode = #tpu.pipeline_mode<synchronous>, transform_indices = @transform_2, window_bounds = array<i64: 4, 8, 32>}, {pipeline_mode = #tpu.pipeline_mode<synchronous>, transform_indices = @transform_3, window_bounds = array<i64: 32, 8>}, {pipeline_mode = #tpu.pipeline_mode<synchronous>, transform_indices = @transform_4, window_bounds = array<i64: 1, 8>}, {transform_indices = @transform_5, window_bounds = array<i64: 1, 8>}]} {
    %c0 = arith.constant 0 : index
    %c0_0 = arith.constant 0 : index
    %c0_1 = arith.constant 0 : index
    %0 = vector.load %arg1[%c0, %c0_0, %c0_1] : memref<1x16x32xf32, #tpu.memory_space<vmem>>, vector<1x16x32xf32>
    %1 = vector.shape_cast %0 : vector<1x16x32xf32> to vector<16x32xf32>
    %2 = tpu.iota {dimensions = array<i32: 0>} : vector<16x1xi32>
    %c16_i32 = arith.constant 16 : i32
    %c0_i32 = arith.constant 0 : i32
    %3 = arith.cmpi eq, %c16_i32, %c0_i32 : i32
    %c1_i32 = arith.constant 1 : i32
    %4 = arith.select %3, %c1_i32, %c16_i32 : i32
    %5 = vector.broadcast %4 : i32 to vector<16x1xi32>
    %6 = arith.remsi %2, %5 : vector<16x1xi32>
    %c0_i32_2 = arith.constant 0 : i32
    %7 = vector.broadcast %c0_i32_2 : i32 to vector<16x1xi32>
    %8 = arith.cmpi ne, %6, %7 : vector<16x1xi32>
    %c0_i32_3 = arith.constant 0 : i32
    %9 = vector.broadcast %c0_i32_3 : i32 to vector<16x1xi32>
    %10 = arith.cmpi slt, %6, %9 : vector<16x1xi32>
    %c0_i32_4 = arith.constant 0 : i32
    %11 = arith.cmpi slt, %4, %c0_i32_4 : i32
    %12 = vector.broadcast %11 : i1 to vector<16x1xi1>
    %13 = vector.broadcast %12 : vector<16x1xi1> to vector<16x1xi1>
    %14 = arith.xori %10, %13 : vector<16x1xi1>
    %15 = arith.andi %14, %8 : vector<16x1xi1>
    %16 = vector.broadcast %4 : i32 to vector<16x1xi32>
    %17 = arith.addi %6, %16 : vector<16x1xi32>
    %18 = arith.select %15, %17, %6 : vector<16x1xi1>, vector<16x1xi32>
    %c0_i32_5 = arith.constant 0 : i32
    %19 = vector.broadcast %c0_i32_5 : i32 to vector<16x1xi32>
    %20 = arith.cmpi eq, %18, %19 : vector<16x1xi32>
    %c1_i32_6 = arith.constant 1 : i32
    %21 = tpu.dynamic_rotate %1 by %c1_i32_6 dim 0 : vector<16x32xf32>, i32 -> vector<16x32xf32>
    %cst = arith.constant 0.000000e+00 : f32
    %22 = vector.shape_cast %20 : vector<16x1xi1> to vector<16x1xi1>
    %23 = vector.broadcast %22 : vector<16x1xi1> to vector<16x32xi1>
    %24 = vector.broadcast %cst : f32 to vector<16x32xf32>
    %25 = arith.select %23, %24, %21 : vector<16x32xi1>, vector<16x32xf32>
    %26 = tpu.concatenate %25, %1 in 1 : vector<16x32xf32>, vector<16x32xf32> -> vector<16x64xf32>
    %27 = arith.truncf %26 : vector<16x64xf32> to vector<16x64xbf16>
    %c0_7 = arith.constant 0 : index
    %c0_8 = arith.constant 0 : index
    %c0_9 = arith.constant 0 : index
    %28 = vector.load %arg2[%c0_7, %c0_8, %c0_9] : memref<4x64x32xbf16, #tpu.memory_space<vmem>>, vector<1x64x32xbf16>
    %29 = vector.shape_cast %28 : vector<1x64x32xbf16> to vector<64x32xbf16>
    %cst_10 = arith.constant dense<0.000000e+00> : vector<16x32xf32>
    %30 = tpu.matmul %27, %29, %cst_10 {dimension_numbers = #tpu.dot_dimension_numbers<[1], [0], [0], [1], [0, 0, 1, 1], [], []>} : vector<16x64xbf16>, vector<64x32xbf16>, vector<16x32xf32> -> vector<16x32xf32>
    %c0_11 = arith.constant 0 : index
    %c0_12 = arith.constant 0 : index
    %c0_13 = arith.constant 0 : index
    %31 = vector.load %arg3[%c0_11, %c0_12, %c0_13] : memref<4x8x32xf32, #tpu.memory_space<vmem>>, vector<1x8x32xf32>
    %32 = vector.shape_cast %31 : vector<1x8x32xf32> to vector<8x32xf32>
    %33 = vector.extract_strided_slice %32 {offsets = [0, 0], sizes = [1, 32], strides = [1, 1]} : vector<8x32xf32> to vector<1x32xf32>
    %34 = vector.broadcast %33 : vector<1x32xf32> to vector<16x32xf32>
    %35 = arith.addf %30, %34 : vector<16x32xf32>
    %36 = vector.shape_cast %35 : vector<16x32xf32> to vector<1x16x32xf32>
    %cst_14 = arith.constant dense<0.000000e+00> : vector<1x32xf32>
    %37 = vector.multi_reduction <add>, %36, %cst_14 [1] : vector<1x16x32xf32> to vector<1x32xf32>
    %38 = vector.shape_cast %37 : vector<1x32xf32> to vector<1x1x32xf32>
    %cst_15 = arith.constant 1.600000e+01 : f32
    %39 = vector.broadcast %cst_15 : f32 to vector<1x1x32xf32>
    %40 = arith.divf %38, %39 : vector<1x1x32xf32>
    %41 = vector.extract_strided_slice %32 {offsets = [3, 0], sizes = [1, 32], strides = [1, 1]} : vector<8x32xf32> to vector<1x32xf32>
    %42 = vector.shape_cast %41 : vector<1x32xf32> to vector<1x1x32xf32>
    %43 = arith.mulf %40, %42 : vector<1x1x32xf32>
    %44 = vector.broadcast %43 : vector<1x1x32xf32> to vector<1x16x32xf32>
    %45 = arith.subf %36, %44 : vector<1x16x32xf32>
    %46 = arith.mulf %45, %45 : vector<1x16x32xf32>
    %cst_16 = arith.constant dense<0.000000e+00> : vector<1x32xf32>
    %47 = vector.multi_reduction <add>, %46, %cst_16 [1] : vector<1x16x32xf32> to vector<1x32xf32>
    %48 = vector.shape_cast %47 : vector<1x32xf32> to vector<1x1x32xf32>
    %cst_17 = arith.constant 1.600000e+01 : f32
    %49 = vector.broadcast %cst_17 : f32 to vector<1x1x32xf32>
    %50 = arith.divf %48, %49 : vector<1x1x32xf32>
    %51 = vector.extract_strided_slice %32 {offsets = [1, 0], sizes = [1, 32], strides = [1, 1]} : vector<8x32xf32> to vector<1x32xf32>
    %cst_18 = arith.constant 9.99999974E-6 : f32
    %52 = vector.broadcast %cst_18 : f32 to vector<1x1x32xf32>
    %53 = arith.addf %50, %52 : vector<1x1x32xf32>
    %54 = math.rsqrt %53 : vector<1x1x32xf32>
    %55 = vector.shape_cast %51 : vector<1x32xf32> to vector<1x1x32xf32>
    %56 = arith.mulf %55, %54 : vector<1x1x32xf32>
    %57 = vector.broadcast %56 : vector<1x1x32xf32> to vector<1x16x32xf32>
    %58 = arith.mulf %45, %57 : vector<1x16x32xf32>
    %59 = vector.extract_strided_slice %32 {offsets = [2, 0], sizes = [1, 32], strides = [1, 1]} : vector<8x32xf32> to vector<1x32xf32>
    %60 = vector.shape_cast %59 : vector<1x32xf32> to vector<1x1x32xf32>
    %61 = vector.broadcast %60 : vector<1x1x32xf32> to vector<1x16x32xf32>
    %62 = arith.addf %58, %61 : vector<1x16x32xf32>
    %63 = vector.shape_cast %62 : vector<1x16x32xf32> to vector<16x32xf32>
    %cst_19 = arith.constant 0.000000e+00 : f32
    %64 = vector.broadcast %cst_19 : f32 to vector<16x32xf32>
    %65 = arith.cmpf ogt, %63, %64 : vector<16x32xf32>
    %cst_20 = arith.constant 1.000000e-01 : f32
    %66 = vector.broadcast %cst_20 : f32 to vector<16x32xf32>
    %67 = arith.mulf %66, %63 : vector<16x32xf32>
    %68 = arith.select %65, %63, %67 : vector<16x32xi1>, vector<16x32xf32>
    %c1_i32_21 = arith.constant 1 : i32
    %69 = tpu.dynamic_rotate %68 by %c1_i32_21 dim 0 : vector<16x32xf32>, i32 -> vector<16x32xf32>
    %cst_22 = arith.constant 0.000000e+00 : f32
    %70 = vector.shape_cast %20 : vector<16x1xi1> to vector<16x1xi1>
    %71 = vector.broadcast %70 : vector<16x1xi1> to vector<16x32xi1>
    %72 = vector.broadcast %cst_22 : f32 to vector<16x32xf32>
    %73 = arith.select %71, %72, %69 : vector<16x32xi1>, vector<16x32xf32>
    %74 = tpu.concatenate %73, %68 in 1 : vector<16x32xf32>, vector<16x32xf32> -> vector<16x64xf32>
    %75 = arith.truncf %74 : vector<16x64xf32> to vector<16x64xbf16>
    %c1 = arith.constant 1 : index
    %c0_23 = arith.constant 0 : index
    %c0_24 = arith.constant 0 : index
    %76 = vector.load %arg2[%c1, %c0_23, %c0_24] : memref<4x64x32xbf16, #tpu.memory_space<vmem>>, vector<1x64x32xbf16>
    %77 = vector.shape_cast %76 : vector<1x64x32xbf16> to vector<64x32xbf16>
    %cst_25 = arith.constant dense<0.000000e+00> : vector<16x32xf32>
    %78 = tpu.matmul %75, %77, %cst_25 {dimension_numbers = #tpu.dot_dimension_numbers<[1], [0], [0], [1], [0, 0, 1, 1], [], []>} : vector<16x64xbf16>, vector<64x32xbf16>, vector<16x32xf32> -> vector<16x32xf32>
    %c1_26 = arith.constant 1 : index
    %c0_27 = arith.constant 0 : index
    %c0_28 = arith.constant 0 : index
    %79 = vector.load %arg3[%c1_26, %c0_27, %c0_28] : memref<4x8x32xf32, #tpu.memory_space<vmem>>, vector<1x8x32xf32>
    %80 = vector.shape_cast %79 : vector<1x8x32xf32> to vector<8x32xf32>
    %81 = vector.extract_strided_slice %80 {offsets = [0, 0], sizes = [1, 32], strides = [1, 1]} : vector<8x32xf32> to vector<1x32xf32>
    %82 = vector.broadcast %81 : vector<1x32xf32> to vector<16x32xf32>
    %83 = arith.addf %78, %82 : vector<16x32xf32>
    %84 = vector.shape_cast %83 : vector<16x32xf32> to vector<1x16x32xf32>
    %cst_29 = arith.constant dense<0.000000e+00> : vector<1x32xf32>
    %85 = vector.multi_reduction <add>, %84, %cst_29 [1] : vector<1x16x32xf32> to vector<1x32xf32>
    %86 = vector.shape_cast %85 : vector<1x32xf32> to vector<1x1x32xf32>
    %cst_30 = arith.constant 1.600000e+01 : f32
    %87 = vector.broadcast %cst_30 : f32 to vector<1x1x32xf32>
    %88 = arith.divf %86, %87 : vector<1x1x32xf32>
    %89 = vector.extract_strided_slice %80 {offsets = [3, 0], sizes = [1, 32], strides = [1, 1]} : vector<8x32xf32> to vector<1x32xf32>
    %90 = vector.shape_cast %89 : vector<1x32xf32> to vector<1x1x32xf32>
    %91 = arith.mulf %88, %90 : vector<1x1x32xf32>
    %92 = vector.broadcast %91 : vector<1x1x32xf32> to vector<1x16x32xf32>
    %93 = arith.subf %84, %92 : vector<1x16x32xf32>
    %94 = arith.mulf %93, %93 : vector<1x16x32xf32>
    %cst_31 = arith.constant dense<0.000000e+00> : vector<1x32xf32>
    %95 = vector.multi_reduction <add>, %94, %cst_31 [1] : vector<1x16x32xf32> to vector<1x32xf32>
    %96 = vector.shape_cast %95 : vector<1x32xf32> to vector<1x1x32xf32>
    %cst_32 = arith.constant 1.600000e+01 : f32
    %97 = vector.broadcast %cst_32 : f32 to vector<1x1x32xf32>
    %98 = arith.divf %96, %97 : vector<1x1x32xf32>
    %99 = vector.extract_strided_slice %80 {offsets = [1, 0], sizes = [1, 32], strides = [1, 1]} : vector<8x32xf32> to vector<1x32xf32>
    %cst_33 = arith.constant 9.99999974E-6 : f32
    %100 = vector.broadcast %cst_33 : f32 to vector<1x1x32xf32>
    %101 = arith.addf %98, %100 : vector<1x1x32xf32>
    %102 = math.rsqrt %101 : vector<1x1x32xf32>
    %103 = vector.shape_cast %99 : vector<1x32xf32> to vector<1x1x32xf32>
    %104 = arith.mulf %103, %102 : vector<1x1x32xf32>
    %105 = vector.broadcast %104 : vector<1x1x32xf32> to vector<1x16x32xf32>
    %106 = arith.mulf %93, %105 : vector<1x16x32xf32>
    %107 = vector.extract_strided_slice %80 {offsets = [2, 0], sizes = [1, 32], strides = [1, 1]} : vector<8x32xf32> to vector<1x32xf32>
    %108 = vector.shape_cast %107 : vector<1x32xf32> to vector<1x1x32xf32>
    %109 = vector.broadcast %108 : vector<1x1x32xf32> to vector<1x16x32xf32>
    %110 = arith.addf %106, %109 : vector<1x16x32xf32>
    %111 = vector.shape_cast %110 : vector<1x16x32xf32> to vector<16x32xf32>
    %cst_34 = arith.constant 0.000000e+00 : f32
    %112 = vector.broadcast %cst_34 : f32 to vector<16x32xf32>
    %113 = arith.cmpf ogt, %111, %112 : vector<16x32xf32>
    %cst_35 = arith.constant 1.000000e-01 : f32
    %114 = vector.broadcast %cst_35 : f32 to vector<16x32xf32>
    %115 = arith.mulf %114, %111 : vector<16x32xf32>
    %116 = arith.select %113, %111, %115 : vector<16x32xi1>, vector<16x32xf32>
    %c1_i32_36 = arith.constant 1 : i32
    %117 = tpu.dynamic_rotate %116 by %c1_i32_36 dim 0 : vector<16x32xf32>, i32 -> vector<16x32xf32>
    %cst_37 = arith.constant 0.000000e+00 : f32
    %118 = vector.shape_cast %20 : vector<16x1xi1> to vector<16x1xi1>
    %119 = vector.broadcast %118 : vector<16x1xi1> to vector<16x32xi1>
    %120 = vector.broadcast %cst_37 : f32 to vector<16x32xf32>
    %121 = arith.select %119, %120, %117 : vector<16x32xi1>, vector<16x32xf32>
    %122 = tpu.concatenate %121, %116 in 1 : vector<16x32xf32>, vector<16x32xf32> -> vector<16x64xf32>
    %123 = arith.truncf %122 : vector<16x64xf32> to vector<16x64xbf16>
    %c2 = arith.constant 2 : index
    %c0_38 = arith.constant 0 : index
    %c0_39 = arith.constant 0 : index
    %124 = vector.load %arg2[%c2, %c0_38, %c0_39] : memref<4x64x32xbf16, #tpu.memory_space<vmem>>, vector<1x64x32xbf16>
    %125 = vector.shape_cast %124 : vector<1x64x32xbf16> to vector<64x32xbf16>
    %cst_40 = arith.constant dense<0.000000e+00> : vector<16x32xf32>
    %126 = tpu.matmul %123, %125, %cst_40 {dimension_numbers = #tpu.dot_dimension_numbers<[1], [0], [0], [1], [0, 0, 1, 1], [], []>} : vector<16x64xbf16>, vector<64x32xbf16>, vector<16x32xf32> -> vector<16x32xf32>
    %c2_41 = arith.constant 2 : index
    %c0_42 = arith.constant 0 : index
    %c0_43 = arith.constant 0 : index
    %127 = vector.load %arg3[%c2_41, %c0_42, %c0_43] : memref<4x8x32xf32, #tpu.memory_space<vmem>>, vector<1x8x32xf32>
    %128 = vector.shape_cast %127 : vector<1x8x32xf32> to vector<8x32xf32>
    %129 = vector.extract_strided_slice %128 {offsets = [0, 0], sizes = [1, 32], strides = [1, 1]} : vector<8x32xf32> to vector<1x32xf32>
    %130 = vector.broadcast %129 : vector<1x32xf32> to vector<16x32xf32>
    %131 = arith.addf %126, %130 : vector<16x32xf32>
    %132 = vector.shape_cast %131 : vector<16x32xf32> to vector<1x16x32xf32>
    %cst_44 = arith.constant dense<0.000000e+00> : vector<1x32xf32>
    %133 = vector.multi_reduction <add>, %132, %cst_44 [1] : vector<1x16x32xf32> to vector<1x32xf32>
    %134 = vector.shape_cast %133 : vector<1x32xf32> to vector<1x1x32xf32>
    %cst_45 = arith.constant 1.600000e+01 : f32
    %135 = vector.broadcast %cst_45 : f32 to vector<1x1x32xf32>
    %136 = arith.divf %134, %135 : vector<1x1x32xf32>
    %137 = vector.extract_strided_slice %128 {offsets = [3, 0], sizes = [1, 32], strides = [1, 1]} : vector<8x32xf32> to vector<1x32xf32>
    %138 = vector.shape_cast %137 : vector<1x32xf32> to vector<1x1x32xf32>
    %139 = arith.mulf %136, %138 : vector<1x1x32xf32>
    %140 = vector.broadcast %139 : vector<1x1x32xf32> to vector<1x16x32xf32>
    %141 = arith.subf %132, %140 : vector<1x16x32xf32>
    %142 = arith.mulf %141, %141 : vector<1x16x32xf32>
    %cst_46 = arith.constant dense<0.000000e+00> : vector<1x32xf32>
    %143 = vector.multi_reduction <add>, %142, %cst_46 [1] : vector<1x16x32xf32> to vector<1x32xf32>
    %144 = vector.shape_cast %143 : vector<1x32xf32> to vector<1x1x32xf32>
    %cst_47 = arith.constant 1.600000e+01 : f32
    %145 = vector.broadcast %cst_47 : f32 to vector<1x1x32xf32>
    %146 = arith.divf %144, %145 : vector<1x1x32xf32>
    %147 = vector.extract_strided_slice %128 {offsets = [1, 0], sizes = [1, 32], strides = [1, 1]} : vector<8x32xf32> to vector<1x32xf32>
    %cst_48 = arith.constant 9.99999974E-6 : f32
    %148 = vector.broadcast %cst_48 : f32 to vector<1x1x32xf32>
    %149 = arith.addf %146, %148 : vector<1x1x32xf32>
    %150 = math.rsqrt %149 : vector<1x1x32xf32>
    %151 = vector.shape_cast %147 : vector<1x32xf32> to vector<1x1x32xf32>
    %152 = arith.mulf %151, %150 : vector<1x1x32xf32>
    %153 = vector.broadcast %152 : vector<1x1x32xf32> to vector<1x16x32xf32>
    %154 = arith.mulf %141, %153 : vector<1x16x32xf32>
    %155 = vector.extract_strided_slice %128 {offsets = [2, 0], sizes = [1, 32], strides = [1, 1]} : vector<8x32xf32> to vector<1x32xf32>
    %156 = vector.shape_cast %155 : vector<1x32xf32> to vector<1x1x32xf32>
    %157 = vector.broadcast %156 : vector<1x1x32xf32> to vector<1x16x32xf32>
    %158 = arith.addf %154, %157 : vector<1x16x32xf32>
    %159 = vector.shape_cast %158 : vector<1x16x32xf32> to vector<16x32xf32>
    %cst_49 = arith.constant 0.000000e+00 : f32
    %160 = vector.broadcast %cst_49 : f32 to vector<16x32xf32>
    %161 = arith.cmpf ogt, %159, %160 : vector<16x32xf32>
    %cst_50 = arith.constant 1.000000e-01 : f32
    %162 = vector.broadcast %cst_50 : f32 to vector<16x32xf32>
    %163 = arith.mulf %162, %159 : vector<16x32xf32>
    %164 = arith.select %161, %159, %163 : vector<16x32xi1>, vector<16x32xf32>
    %c1_i32_51 = arith.constant 1 : i32
    %165 = tpu.dynamic_rotate %164 by %c1_i32_51 dim 0 : vector<16x32xf32>, i32 -> vector<16x32xf32>
    %cst_52 = arith.constant 0.000000e+00 : f32
    %166 = vector.shape_cast %20 : vector<16x1xi1> to vector<16x1xi1>
    %167 = vector.broadcast %166 : vector<16x1xi1> to vector<16x32xi1>
    %168 = vector.broadcast %cst_52 : f32 to vector<16x32xf32>
    %169 = arith.select %167, %168, %165 : vector<16x32xi1>, vector<16x32xf32>
    %170 = tpu.concatenate %169, %164 in 1 : vector<16x32xf32>, vector<16x32xf32> -> vector<16x64xf32>
    %171 = arith.truncf %170 : vector<16x64xf32> to vector<16x64xbf16>
    %c3 = arith.constant 3 : index
    %c0_53 = arith.constant 0 : index
    %c0_54 = arith.constant 0 : index
    %172 = vector.load %arg2[%c3, %c0_53, %c0_54] : memref<4x64x32xbf16, #tpu.memory_space<vmem>>, vector<1x64x32xbf16>
    %173 = vector.shape_cast %172 : vector<1x64x32xbf16> to vector<64x32xbf16>
    %cst_55 = arith.constant dense<0.000000e+00> : vector<16x32xf32>
    %174 = tpu.matmul %171, %173, %cst_55 {dimension_numbers = #tpu.dot_dimension_numbers<[1], [0], [0], [1], [0, 0, 1, 1], [], []>} : vector<16x64xbf16>, vector<64x32xbf16>, vector<16x32xf32> -> vector<16x32xf32>
    %c3_56 = arith.constant 3 : index
    %c0_57 = arith.constant 0 : index
    %c0_58 = arith.constant 0 : index
    %175 = vector.load %arg3[%c3_56, %c0_57, %c0_58] : memref<4x8x32xf32, #tpu.memory_space<vmem>>, vector<1x8x32xf32>
    %176 = vector.shape_cast %175 : vector<1x8x32xf32> to vector<8x32xf32>
    %177 = vector.extract_strided_slice %176 {offsets = [0, 0], sizes = [1, 32], strides = [1, 1]} : vector<8x32xf32> to vector<1x32xf32>
    %178 = vector.broadcast %177 : vector<1x32xf32> to vector<16x32xf32>
    %179 = arith.addf %174, %178 : vector<16x32xf32>
    %180 = vector.shape_cast %179 : vector<16x32xf32> to vector<1x16x32xf32>
    %cst_59 = arith.constant dense<0.000000e+00> : vector<1x32xf32>
    %181 = vector.multi_reduction <add>, %180, %cst_59 [1] : vector<1x16x32xf32> to vector<1x32xf32>
    %182 = vector.shape_cast %181 : vector<1x32xf32> to vector<1x1x32xf32>
    %cst_60 = arith.constant 1.600000e+01 : f32
    %183 = vector.broadcast %cst_60 : f32 to vector<1x1x32xf32>
    %184 = arith.divf %182, %183 : vector<1x1x32xf32>
    %185 = vector.extract_strided_slice %176 {offsets = [3, 0], sizes = [1, 32], strides = [1, 1]} : vector<8x32xf32> to vector<1x32xf32>
    %186 = vector.shape_cast %185 : vector<1x32xf32> to vector<1x1x32xf32>
    %187 = arith.mulf %184, %186 : vector<1x1x32xf32>
    %188 = vector.broadcast %187 : vector<1x1x32xf32> to vector<1x16x32xf32>
    %189 = arith.subf %180, %188 : vector<1x16x32xf32>
    %190 = arith.mulf %189, %189 : vector<1x16x32xf32>
    %cst_61 = arith.constant dense<0.000000e+00> : vector<1x32xf32>
    %191 = vector.multi_reduction <add>, %190, %cst_61 [1] : vector<1x16x32xf32> to vector<1x32xf32>
    %192 = vector.shape_cast %191 : vector<1x32xf32> to vector<1x1x32xf32>
    %cst_62 = arith.constant 1.600000e+01 : f32
    %193 = vector.broadcast %cst_62 : f32 to vector<1x1x32xf32>
    %194 = arith.divf %192, %193 : vector<1x1x32xf32>
    %195 = vector.extract_strided_slice %176 {offsets = [1, 0], sizes = [1, 32], strides = [1, 1]} : vector<8x32xf32> to vector<1x32xf32>
    %cst_63 = arith.constant 9.99999974E-6 : f32
    %196 = vector.broadcast %cst_63 : f32 to vector<1x1x32xf32>
    %197 = arith.addf %194, %196 : vector<1x1x32xf32>
    %198 = math.rsqrt %197 : vector<1x1x32xf32>
    %199 = vector.shape_cast %195 : vector<1x32xf32> to vector<1x1x32xf32>
    %200 = arith.mulf %199, %198 : vector<1x1x32xf32>
    %201 = vector.broadcast %200 : vector<1x1x32xf32> to vector<1x16x32xf32>
    %202 = arith.mulf %189, %201 : vector<1x16x32xf32>
    %203 = vector.extract_strided_slice %176 {offsets = [2, 0], sizes = [1, 32], strides = [1, 1]} : vector<8x32xf32> to vector<1x32xf32>
    %204 = vector.shape_cast %203 : vector<1x32xf32> to vector<1x1x32xf32>
    %205 = vector.broadcast %204 : vector<1x1x32xf32> to vector<1x16x32xf32>
    %206 = arith.addf %202, %205 : vector<1x16x32xf32>
    %207 = vector.shape_cast %206 : vector<1x16x32xf32> to vector<16x32xf32>
    %208 = arith.addf %1, %207 : vector<16x32xf32>
    %cst_64 = arith.constant 0.000000e+00 : f32
    %209 = vector.broadcast %cst_64 : f32 to vector<16x32xf32>
    %210 = arith.maximumf %208, %209 : vector<16x32xf32>
    %211 = vector.shape_cast %210 : vector<16x32xf32> to vector<1x16x32xf32>
    %cst_65 = arith.constant dense<0.000000e+00> : vector<1x32xf32>
    %212 = vector.multi_reduction <add>, %211, %cst_65 [1] : vector<1x16x32xf32> to vector<1x32xf32>
    %cst_66 = arith.constant 1.600000e+01 : f32
    %213 = vector.broadcast %cst_66 : f32 to vector<1x32xf32>
    %214 = arith.divf %212, %213 : vector<1x32xf32>
    %215 = arith.truncf %214 : vector<1x32xf32> to vector<1x32xbf16>
    %c0_67 = arith.constant 0 : index
    %c0_68 = arith.constant 0 : index
    %216 = vector.load %arg4[%c0_67, %c0_68] : memref<32x8xbf16, #tpu.memory_space<vmem>>, vector<32x8xbf16>
    %cst_69 = arith.constant dense<0.000000e+00> : vector<1x8xf32>
    %217 = tpu.matmul %215, %216, %cst_69 {dimension_numbers = #tpu.dot_dimension_numbers<[1], [0], [0], [1], [0, 0, 1, 1], [], []>} : vector<1x32xbf16>, vector<32x8xbf16>, vector<1x8xf32> -> vector<1x8xf32>
    %c0_70 = arith.constant 0 : index
    %c0_71 = arith.constant 0 : index
    %218 = vector.load %arg5[%c0_70, %c0_71] : memref<1x8xf32, #tpu.memory_space<vmem>>, vector<1x8xf32>
    %219 = arith.addf %217, %218 : vector<1x8xf32>
    %cst_72 = arith.constant 0.000000e+00 : f32
    %220 = vector.broadcast %cst_72 : f32 to vector<1x8xf32>
    %221 = arith.maximumf %219, %220 : vector<1x8xf32>
    %222 = math.absf %219 : vector<1x8xf32>
    %cst_73 = arith.constant 0.000000e+00 : f32
    %223 = vector.broadcast %cst_73 : f32 to vector<1x8xf32>
    %224 = arith.subf %223, %222 : vector<1x8xf32>
    %225 = math.exp %224 : vector<1x8xf32>
    %226 = math.log1p %225 : vector<1x8xf32>
    %227 = arith.addf %221, %226 : vector<1x8xf32>
    %c0_74 = arith.constant 0 : index
    %c0_75 = arith.constant 0 : index
    %228 = vector.load %arg6[%c0_74, %c0_75] : memref<1x8xf32, #tpu.memory_space<vmem>>, vector<1x8xf32>
    tpu.vector_store %arg6[%c0_74, %c0_75], %227 {strides = array<i32>} : memref<1x8xf32, #tpu.memory_space<vmem>>, vector<1x8xf32>,
    return
  }
  func.func @transform_0(%arg0: i32) -> (i32, i32, i32) {
    %c0_i32 = arith.constant 0 : i32
    %c0_i32_0 = arith.constant 0 : i32
    %c0_i32_1 = arith.constant 0 : i32
    return %arg0, %c0_i32, %c0_i32_0 : i32, i32, i32
  }
  func.func @transform_1(%arg0: i32) -> (i32, i32, i32) {
    %c0_i32 = arith.constant 0 : i32
    %c0_i32_0 = arith.constant 0 : i32
    %c0_i32_1 = arith.constant 0 : i32
    %c0_i32_2 = arith.constant 0 : i32
    return %c0_i32, %c0_i32_0, %c0_i32_1 : i32, i32, i32
  }
  func.func @transform_2(%arg0: i32) -> (i32, i32, i32) {
    %c0_i32 = arith.constant 0 : i32
    %c0_i32_0 = arith.constant 0 : i32
    %c0_i32_1 = arith.constant 0 : i32
    %c0_i32_2 = arith.constant 0 : i32
    return %c0_i32, %c0_i32_0, %c0_i32_1 : i32, i32, i32
  }
  func.func @transform_3(%arg0: i32) -> (i32, i32) {
    %c0_i32 = arith.constant 0 : i32
    %c0_i32_0 = arith.constant 0 : i32
    %c0_i32_1 = arith.constant 0 : i32
    return %c0_i32, %c0_i32_0 : i32, i32
  }
  func.func @transform_4(%arg0: i32) -> (i32, i32) {
    %c0_i32 = arith.constant 0 : i32
    %c0_i32_0 = arith.constant 0 : i32
    %c0_i32_1 = arith.constant 0 : i32
    return %c0_i32, %c0_i32_0 : i32, i32
  }
  func.func @transform_5(%arg0: i32) -> (i32, i32) {
    %c0_i32 = arith.constant 0 : i32
    %c0_i32_0 = arith.constant 0 : i32
    return %arg0, %c0_i32 : i32, i32
  }
}

</mosaic_0001>

<llo_original>
// kernel: gcn1_forward.1
$region0: #{gcn1_forward.1}
  #allocation0 [shape = 'u32[]', space=smem, size = 0x4, offset = 0x4, fixed_abs, tag = 'smem constant byte address 0x4 - core index']
  #allocation1 [shape = 'u32[144,128]{1,0:T(1,128)}', space=vmem, size = 0x12000, scoped, tag = 'internal scratch']
  %s0 = inlined_call_operand.vmem [shape: f32[1,16,32], index: 0, kind: input, shape index: {}]
  %s1 = inlined_call_operand.vmem [shape: bf16[4,64,32], index: 1, kind: input, shape index: {}]
  %s2 = inlined_call_operand.vmem [shape: f32[4,8,32], index: 2, kind: input, shape index: {}]
  %s3 = inlined_call_operand.vmem [shape: bf16[32,8], index: 3, kind: input, shape index: {}]
  %s4 = inlined_call_operand.vmem [shape: f32[1,8], index: 4, kind: input, shape index: {}]
  %s5 = inlined_call_operand.hbm [shape: f32[1,8], index: 5, kind: output, shape index: {}]
  %s6 = sld [smem:[#allocation0]]
  $region30: #{gcn1_forward.1} parent=0
    _
  %s8 = ssub.s32 1, %s6
  %s9 = scalar_select 0, %s8, %s6
  $region1: #{gcn1_forward.1} parent=0
    #allocation2 [shape = 'u8[512]{0}', space=vmem, size = 0x400, scoped, tag = 'output window, operand 0, single buffered']
    #allocation3 [shape = 's32[1]{0}', space=sflag, size = 0x4, scoped, tag = 'scoped memory for gcn1_forward.1']
    %10 = vsyncpa [#allocation3], 0
    // Predicated region
    $region2: #{gcn1_forward.1} parent=1 // pred_check
      _
    $region3: #{gcn1_forward.1} parent=1 // pred_check_branch
      %12 = sbr.rel (0) target = $region5
    $region4: #{gcn1_forward.1} parent=1 // pred_region
      _
    $region5: #{gcn1_forward.1} parent=1 // pred_fallthru
      _
    // Predicated region
    $region6: #{gcn1_forward.1} parent=1 // pred_check
      _
    $region7: #{gcn1_forward.1} parent=1 // pred_check_branch
      %14 = sbr.rel (0) target = $region9
    $region8: #{gcn1_forward.1} parent=1 // pred_region
      _
    $region9: #{gcn1_forward.1} parent=1 // pred_fallthru
      _
    // Predicated region
    $region10: #{gcn1_forward.1} parent=1 // pred_check
      _
    $region11: #{gcn1_forward.1} parent=1 // pred_check_branch
      %16 = sbr.rel (0) target = $region13
    $region12: #{gcn1_forward.1} parent=1 // pred_region
      _
    $region13: #{gcn1_forward.1} parent=1 // pred_fallthru
      _
    // Predicated region
    $region14: #{gcn1_forward.1} parent=1 // pred_check
      _
    $region15: #{gcn1_forward.1} parent=1 // pred_check_branch
      %18 = sbr.rel (0) target = $region17
    $region16: #{gcn1_forward.1} parent=1 // pred_region
      _
    $region17: #{gcn1_forward.1} parent=1 // pred_fallthru
      _
    // Predicated region
    $region18: #{gcn1_forward.1} parent=1 // pred_check
      _
    $region19: #{gcn1_forward.1} parent=1 // pred_check_branch
      %20 = sbr.rel (0) target = $region21
    $region20: #{gcn1_forward.1} parent=1 // pred_region
      _
    $region21: #{gcn1_forward.1} parent=1 // pred_fallthru
      _
    %v22 = vld [vmem:[%s0] sm:$0xff]
    %v23 = vld [vmem:[%s0 + $0x8] sm:$0xff]
    %v24 = vlaneseq
    %v25 = vshrl.u32 %v24, 7
    %v26 = vadd.s32 %v25, 8
    %vm27 = vcmp.lt.s32.totalorder %v25, 0
    %v28 = vsub.s32 0, %v25
    %v29 = vsel %vm27, %v28, %v25
    %v30 = vshrl.u32 %v29, 4
    %v31 = vand.u32 %v29, 15
    %v32 = vsub.s32 0, %v31
    %v33 = vsel %vm27, %v32, %v31
    %vm34 = vcmp.lt.s32.totalorder %v26, 0
    %v35 = vsub.s32 0, %v26
    %v36 = vsel %vm34, %v35, %v26
    %v37 = vshrl.u32 %v36, 4
    %v38 = vand.u32 %v36, 15
    %v39 = vsub.s32 0, %v38
    %v40 = vsel %vm34, %v39, %v38
    %vm41 = vcmp.ne.s32.totalorder %v33, 0
    %vm42 = vcmp.ne.s32.totalorder %v40, 0
    %vm43 = vcmp.lt.s32.totalorder %v33, 0
    %vm44 = vcmp.lt.s32.totalorder %v40, 0
    %vm45 = vmand %vm43, %vm41
    %vm46 = vmand %vm44, %vm42
    %v47 = vadd.s32 %v33, 16
    %v48 = vadd.s32 %v40, 16
    %v49 = vsel %vm45, %v47, %v33
    %v50 = vsel %vm46, %v48, %v40
    %vm51 = vcmp.eq.s32.totalorder %v49, 0
    %vm52 = vcmp.eq.s32.totalorder %v50, 0
    %v53 = vrot.slane %v22, 7
    %v54 = vrot.slane %v23, 7
    %vm55 = vcmp.lt.s32.totalorder %v25, 1
    %v56 = vsel %vm55, %v53, %v54
    %v57 = vsel %vm55, %v54, %v53
    %v58 = vsel %vm51, 1, 0
    %v59 = vsel %vm52, 1, 0
    %vm60 = vcmp.eq.s32.totalorder %v58, 1
    %vm61 = vcmp.eq.s32.totalorder %v59, 1
    %v62 = vsel %vm60, 0.0, %v57
    %v63 = vsel %vm61, 0.0, %v56
    %66 = vrot.lane.b32.xlu0 %v22, 32
    %v67 = vpop.permute.xlu0 %66
    %68 = vrot.lane.b32.xlu0 %v23, 32
    %v69 = vpop.permute.xlu0 %68
    %vm72 = vcmask 261120
    %v73 = vsel %vm72, %v62, %v67
    %v74 = vsel %vm72, %v63, %v69
    %v75 = vpack.c.bf16 %v74, %v73
    %v76 = vld [vmem:[%s1] sm:$0xf]
    %v77 = vld [vmem:[%s1 + $0x4] sm:$0xf]
    %v78 = vld [vmem:[%s1 + $0x8] sm:$0xf]
    %v79 = vld [vmem:[%s1 + $0xc] sm:$0xf]
    %v80 = vld [vmem:[%s1 + $0x10] sm:$0xf]
    %v81 = vld [vmem:[%s1 + $0x14] sm:$0xf]
    %v82 = vld [vmem:[%s1 + $0x18] sm:$0xf]
    %v83 = vld [vmem:[%s1 + $0x1c] sm:$0xf]
    %v84 = vld [vmem:[%s2] sm:$0xff]
    %v85 = vlaneseq
    %v86 = vshrl.u32 %v85, 7
    %v87 = vsub.s32 0, %v86
    %v88 = vrot.slane %v84, %v87
    %v97 = vunpack.c.l.b16 %v76
    %v98 = vunpack.c.l.b16 %v77
    %v99 = vunpack.c.l.b16 %v78
    %v100 = vunpack.c.l.b16 %v79
    %v101 = vunpack.c.l.b16 %v80
    %v102 = vunpack.c.l.b16 %v81
    %v103 = vunpack.c.l.b16 %v82
    %v104 = vunpack.c.l.b16 %v83
    %v105 = vpack.c.b16 %v98, %v97
    %v106 = vpack.c.b16 %v100, %v99
    %v107 = vpack.c.b16 %v102, %v101
    %v108 = vpack.c.b16 %v104, %v103
    %vm113 = vcmask 523264
    %v115 = vsel %vm113, %v75, 0
    %117 = vmatprep.subr.bf16.mxu0 0
    %118 = vmatpush1.bf16.msra.mxu0 0
    %119 = vmatprep.subr.bf16.mxu0 0
    %120 = vmatpush1.bf16.msra.mxu0 0
    %121 = vmatprep.subr.bf16.mxu0 0
    %122 = vmatpush1.bf16.msra.mxu0 0
    %123 = vmatprep.subr.bf16.mxu0 0
    %124 = vmatpush1.bf16.msra.mxu0 0
    %125 = vmatprep.subr.bf16.mxu0 0
    %126 = vmatpush1.bf16.msra.mxu0 %v108
    %127 = vmatprep.subr.bf16.mxu0 0
    %128 = vmatpush1.bf16.msra.mxu0 %v107
    %129 = vmatprep.subr.bf16.mxu0 0
    %130 = vmatpush1.bf16.msra.mxu0 %v106
    %131 = vmatprep.subr.bf16.mxu0 0
    %132 = vmatpush1.bf16.msra.mxu0 %v105
    %133 = vmatprep.subr.bf16.mxu0 0
    %134 = vmatpush2.bf16.msra.mxu0 0
    %135 = vmatprep.subr.bf16.mxu0 0
    %136 = vmatpush2.bf16.msra.mxu0 0
    %137 = vmatprep.subr.bf16.mxu0 0
    %138 = vmatpush2.bf16.msra.mxu0 0
    %139 = vmatprep.subr.bf16.mxu0 0
    %140 = vmatpush2.bf16.msra.mxu0 0
    %141 = vmatprep.subr.bf16.mxu0 0
    %142 = vmatpush2.bf16.msra.mxu0 0
    %143 = vmatprep.subr.bf16.mxu0 0
    %144 = vmatpush2.bf16.msra.mxu0 0
    %145 = vmatprep.subr.bf16.mxu0 0
    %146 = vmatpush2.bf16.msra.mxu0 0
    %147 = vmatprep.subr.bf16.mxu0 0
    %148 = vmatpush2.bf16.msra.mxu0 0
    %149 = vmatprep.mubr.bf16.mxu0 0
    %150 = vmatmul.mubr.bf16.gmra.mxu0 %v115
    %v151 = vpop.f32.mrf.mxu0
    %v152 = vadd.f32 %v88, %v151
    %v153 = vpop.f32.mrf.mxu0
    %v154 = vpop.f32.mrf.mxu0
    %v155 = vadd.f32 %v88, %v154
    %v156 = vpop.f32.mrf.mxu0
    %157 = vdwg.mxu0
    %v158 = vsel %vm72, %v152, 0.0
    %v159 = vsel %vm72, %v155, 0.0
    %v160 = vadd.f32 %v158, %v159
    %v161 = vrot.slane %v160, 4
    %v162 = vadd.f32 %v160, %v161
    %v163 = vrot.slane %v162, 2
    %v164 = vadd.f32 %v162, %v163
    %v165 = vrot.slane %v164, 1
    %v166 = vadd.f32 %v164, %v165
    %v167 = vrcp.pop 16.0
    %v168 = vmul.f32 %v166, %v167
    %v169 = vmul.f32 %v168, %v84
    %v170 = vlaneseq
    %v171 = vshrl.u32 %v170, 7
    %v172 = vsub.s32 3, %v171
    %v173 = vrot.slane %v169, %v172
    %v174 = vsub.f32 %v152, %v173
    %v175 = vsub.f32 %v155, %v173
    %v176 = vmul.f32 %v174, %v174
    %v177 = vmul.f32 %v175, %v175
    %v178 = vsel %vm72, %v176, 0.0
    %v179 = vsel %vm72, %v177, 0.0
    %v180 = vadd.f32 %v178, %v179
    %v181 = vrot.slane %v180, 4
    %v182 = vadd.f32 %v180, %v181
    %v183 = vrot.slane %v182, 2
    %v184 = vadd.f32 %v182, %v183
    %v185 = vrot.slane %v184, 1
    %v186 = vadd.f32 %v184, %v185
    %v187 = vmul.f32 %v186, %v167
    %v188 = vadd.f32 %v187, 1e-05
    %v189 = vrsqrt.pop %v188
    %v190 = vmul.f32 %v84, %v189
    %v191 = vlaneseq
    %v192 = vshrl.u32 %v191, 7
    %v193 = vsub.s32 1, %v192
    %v194 = vrot.slane %v190, %v193
    %v195 = vmul.f32 %v174, %v194
    %v196 = vmul.f32 %v175, %v194
    %v197 = vlaneseq
    %v198 = vshrl.u32 %v197, 7
    %v199 = vsub.s32 2, %v198
    %v200 = vrot.slane %v84, %v199
    %v201 = vadd.f32 %v195, %v200
    %v202 = vadd.f32 %v196, %v200
    %vm203 = vcmp.gt.f32.partialorder %v201, 0.0
    %vm204 = vcmp.gt.f32.partialorder %v202, 0.0
    %v205 = vmul.f32 %v201, 0.1
    %v206 = vmul.f32 %v202, 0.1
    %v207 = vsel %vm203, %v201, %v205
    %v208 = vsel %vm204, %v202, %v206
    %v209 = vrot.slane %v207, 7
    %v210 = vrot.slane %v208, 7
    %v211 = vsel %vm55, %v209, %v210
    %v212 = vsel %vm55, %v210, %v209
    %v213 = vsel %vm60, 0.0, %v212
    %v214 = vsel %vm61, 0.0, %v211
    %217 = vrot.lane.b32.xlu0 %v207, 32
    %v218 = vpop.permute.xlu0 %217
    %219 = vrot.lane.b32.xlu0 %v208, 32
    %v220 = vpop.permute.xlu0 %219
    %v223 = vsel %vm72, %v213, %v218
    %v224 = vsel %vm72, %v214, %v220
    %v225 = vpack.c.bf16 %v224, %v223
    %s226 = scalar_lea.vmem %s1, 32
    %v227 = vld [vmem:[%s226] sm:$0xf]
    %v228 = vld [vmem:[%s226 + $0x4] sm:$0xf]
    %v229 = vld [vmem:[%s226 + $0x8] sm:$0xf]
    %v230 = vld [vmem:[%s226 + $0xc] sm:$0xf]
    %v231 = vld [vmem:[%s226 + $0x10] sm:$0xf]
    %v232 = vld [vmem:[%s226 + $0x14] sm:$0xf]
    %v233 = vld [vmem:[%s226 + $0x18] sm:$0xf]
    %v234 = vld [vmem:[%s226 + $0x1c] sm:$0xf]
    %s235 = scalar_lea.vmem %s2, 8
    %v236 = vld [vmem:[%s235] sm:$0xff]
    %v237 = vlaneseq
    %v238 = vshrl.u32 %v237, 7
    %v239 = vsub.s32 0, %v238
    %v240 = vrot.slane %v236, %v239
    %v249 = vunpack.c.l.b16 %v227
    %v250 = vunpack.c.l.b16 %v228
    %v251 = vunpack.c.l.b16 %v229
    %v252 = vunpack.c.l.b16 %v230
    %v253 = vunpack.c.l.b16 %v231
    %v254 = vunpack.c.l.b16 %v232
    %v255 = vunpack.c.l.b16 %v233
    %v256 = vunpack.c.l.b16 %v234
    %v257 = vpack.c.b16 %v250, %v249
    %v258 = vpack.c.b16 %v252, %v251
    %v259 = vpack.c.b16 %v254, %v253
    %v260 = vpack.c.b16 %v256, %v255
    %v266 = vsel %vm113, %v225, 0
    %268 = vmatprep.subr.bf16.mxu0 0
    %269 = vmatpush1.bf16.msra.mxu0 0
    %270 = vmatprep.subr.bf16.mxu0 0
    %271 = vmatpush1.bf16.msra.mxu0 0
    %272 = vmatprep.subr.bf16.mxu0 0
    %273 = vmatpush1.bf16.msra.mxu0 0
    %274 = vmatprep.subr.bf16.mxu0 0
    %275 = vmatpush1.bf16.msra.mxu0 0
    %276 = vmatprep.subr.bf16.mxu0 0
    %277 = vmatpush1.bf16.msra.mxu0 %v260
    %278 = vmatprep.subr.bf16.mxu0 0
    %279 = vmatpush1.bf16.msra.mxu0 %v259
    %280 = vmatprep.subr.bf16.mxu0 0
    %281 = vmatpush1.bf16.msra.mxu0 %v258
    %282 = vmatprep.subr.bf16.mxu0 0
    %283 = vmatpush1.bf16.msra.mxu0 %v257
    %284 = vmatprep.subr.bf16.mxu0 0
    %285 = vmatpush2.bf16.msra.mxu0 0
    %286 = vmatprep.subr.bf16.mxu0 0
    %287 = vmatpush2.bf16.msra.mxu0 0
    %288 = vmatprep.subr.bf16.mxu0 0
    %289 = vmatpush2.bf16.msra.mxu0 0
    %290 = vmatprep.subr.bf16.mxu0 0
    %291 = vmatpush2.bf16.msra.mxu0 0
    %292 = vmatprep.subr.bf16.mxu0 0
    %293 = vmatpush2.bf16.msra.mxu0 0
    %294 = vmatprep.subr.bf16.mxu0 0
    %295 = vmatpush2.bf16.msra.mxu0 0
    %296 = vmatprep.subr.bf16.mxu0 0
    %297 = vmatpush2.bf16.msra.mxu0 0
    %298 = vmatprep.subr.bf16.mxu0 0
    %299 = vmatpush2.bf16.msra.mxu0 0
    %300 = vmatprep.mubr.bf16.mxu0 0
    %301 = vmatmul.mubr.bf16.gmra.mxu0 %v266
    %v302 = vpop.f32.mrf.mxu0
    %v303 = vadd.f32 %v240, %v302
    %v304 = vpop.f32.mrf.mxu0
    %v305 = vpop.f32.mrf.mxu0
    %v306 = vadd.f32 %v240, %v305
    %v307 = vpop.f32.mrf.mxu0
    %308 = vdwg.mxu0
    %v309 = vsel %vm72, %v303, 0.0
    %v310 = vsel %vm72, %v306, 0.0
    %v311 = vadd.f32 %v309, %v310
    %v312 = vrot.slane %v311, 4
    %v313 = vadd.f32 %v311, %v312
    %v314 = vrot.slane %v313, 2
    %v315 = vadd.f32 %v313, %v314
    %v316 = vrot.slane %v315, 1
    %v317 = vadd.f32 %v315, %v316
    %v318 = vmul.f32 %v317, %v167
    %v319 = vmul.f32 %v318, %v236
    %v320 = vlaneseq
    %v321 = vshrl.u32 %v320, 7
    %v322 = vsub.s32 3, %v321
    %v323 = vrot.slane %v319, %v322
    %v324 = vsub.f32 %v303, %v323
    %v325 = vsub.f32 %v306, %v323
    %v326 = vmul.f32 %v324, %v324
    %v327 = vmul.f32 %v325, %v325
    %v328 = vsel %vm72, %v326, 0.0
    %v329 = vsel %vm72, %v327, 0.0
    %v330 = vadd.f32 %v328, %v329
    %v331 = vrot.slane %v330, 4
    %v332 = vadd.f32 %v330, %v331
    %v333 = vrot.slane %v332, 2
    %v334 = vadd.f32 %v332, %v333
    %v335 = vrot.slane %v334, 1
    %v336 = vadd.f32 %v334, %v335
    %v337 = vmul.f32 %v336, %v167
    %v338 = vadd.f32 %v337, 1e-05
    %v339 = vrsqrt.pop %v338
    %v340 = vmul.f32 %v236, %v339
    %v341 = vlaneseq
    %v342 = vshrl.u32 %v341, 7
    %v343 = vsub.s32 1, %v342
    %v344 = vrot.slane %v340, %v343
    %v345 = vmul.f32 %v324, %v344
    %v346 = vmul.f32 %v325, %v344
    %v347 = vlaneseq
    %v348 = vshrl.u32 %v347, 7
    %v349 = vsub.s32 2, %v348
    %v350 = vrot.slane %v236, %v349
    %v351 = vadd.f32 %v345, %v350
    %v352 = vadd.f32 %v346, %v350
    %vm353 = vcmp.gt.f32.partialorder %v351, 0.0
    %vm354 = vcmp.gt.f32.partialorder %v352, 0.0
    %v355 = vmul.f32 %v351, 0.1
    %v356 = vmul.f32 %v352, 0.1
    %v357 = vsel %vm353, %v351, %v355
    %v358 = vsel %vm354, %v352, %v356
    %v359 = vrot.slane %v357, 7
    %v360 = vrot.slane %v358, 7
    %v361 = vsel %vm55, %v359, %v360
    %v362 = vsel %vm55, %v360, %v359
    %v363 = vsel %vm60, 0.0, %v362
    %v364 = vsel %vm61, 0.0, %v361
    %367 = vrot.lane.b32.xlu0 %v357, 32
    %v368 = vpop.permute.xlu0 %367
    %369 = vrot.lane.b32.xlu0 %v358, 32
    %v370 = vpop.permute.xlu0 %369
    %v373 = vsel %vm72, %v363, %v368
    %v374 = vsel %vm72, %v364, %v370
    %v375 = vpack.c.bf16 %v374, %v373
    %s376 = scalar_lea.vmem %s1, 64
    %v377 = vld [vmem:[%s376] sm:$0xf]
    %v378 = vld [vmem:[%s376 + $0x4] sm:$0xf]
    %v379 = vld [vmem:[%s376 + $0x8] sm:$0xf]
    %v380 = vld [vmem:[%s376 + $0xc] sm:$0xf]
    %v381 = vld [vmem:[%s376 + $0x10] sm:$0xf]
    %v382 = vld [vmem:[%s376 + $0x14] sm:$0xf]
    %v383 = vld [vmem:[%s376 + $0x18] sm:$0xf]
    %v384 = vld [vmem:[%s376 + $0x1c] sm:$0xf]
    %s385 = scalar_lea.vmem %s2, 16
    %v386 = vld [vmem:[%s385] sm:$0xff]
    %v387 = vlaneseq
    %v388 = vshrl.u32 %v387, 7
    %v389 = vsub.s32 0, %v388
    %v390 = vrot.slane %v386, %v389
    %v399 = vunpack.c.l.b16 %v377
    %v400 = vunpack.c.l.b16 %v378
    %v401 = vunpack.c.l.b16 %v379
    %v402 = vunpack.c.l.b16 %v380
    %v403 = vunpack.c.l.b16 %v381
    %v404 = vunpack.c.l.b16 %v382
    %v405 = vunpack.c.l.b16 %v383
    %v406 = vunpack.c.l.b16 %v384
    %v407 = vpack.c.b16 %v400, %v399
    %v408 = vpack.c.b16 %v402, %v401
    %v409 = vpack.c.b16 %v404, %v403
    %v410 = vpack.c.b16 %v406, %v405
    %v416 = vsel %vm113, %v375, 0
    %418 = vmatprep.subr.bf16.mxu0 0
    %419 = vmatpush1.bf16.msra.mxu0 0
    %420 = vmatprep.subr.bf16.mxu0 0
    %421 = vmatpush1.bf16.msra.mxu0 0
    %422 = vmatprep.subr.bf16.mxu0 0
    %423 = vmatpush1.bf16.msra.mxu0 0
    %424 = vmatprep.subr.bf16.mxu0 0
    %425 = vmatpush1.bf16.msra.mxu0 0
    %426 = vmatprep.subr.bf16.mxu0 0
    %427 = vmatpush1.bf16.msra.mxu0 %v410
    %428 = vmatprep.subr.bf16.mxu0 0
    %429 = vmatpush1.bf16.msra.mxu0 %v409
    %430 = vmatprep.subr.bf16.mxu0 0
    %431 = vmatpush1.bf16.msra.mxu0 %v408
    %432 = vmatprep.subr.bf16.mxu0 0
    %433 = vmatpush1.bf16.msra.mxu0 %v407
    %434 = vmatprep.subr.bf16.mxu0 0
    %435 = vmatpush2.bf16.msra.mxu0 0
    %436 = vmatprep.subr.bf16.mxu0 0
    %437 = vmatpush2.bf16.msra.mxu0 0
    %438 = vmatprep.subr.bf16.mxu0 0
    %439 = vmatpush2.bf16.msra.mxu0 0
    %440 = vmatprep.subr.bf16.mxu0 0
    %441 = vmatpush2.bf16.msra.mxu0 0
    %442 = vmatprep.subr.bf16.mxu0 0
    %443 = vmatpush2.bf16.msra.mxu0 0
    %444 = vmatprep.subr.bf16.mxu0 0
    %445 = vmatpush2.bf16.msra.mxu0 0
    %446 = vmatprep.subr.bf16.mxu0 0
    %447 = vmatpush2.bf16.msra.mxu0 0
    %448 = vmatprep.subr.bf16.mxu0 0
    %449 = vmatpush2.bf16.msra.mxu0 0
    %450 = vmatprep.mubr.bf16.mxu0 0
    %451 = vmatmul.mubr.bf16.gmra.mxu0 %v416
    %v452 = vpop.f32.mrf.mxu0
    %v453 = vadd.f32 %v390, %v452
    %v454 = vpop.f32.mrf.mxu0
    %v455 = vpop.f32.mrf.mxu0
    %v456 = vadd.f32 %v390, %v455
    %v457 = vpop.f32.mrf.mxu0
    %458 = vdwg.mxu0
    %v459 = vsel %vm72, %v453, 0.0
    %v460 = vsel %vm72, %v456, 0.0
    %v461 = vadd.f32 %v459, %v460
    %v462 = vrot.slane %v461, 4
    %v463 = vadd.f32 %v461, %v462
    %v464 = vrot.slane %v463, 2
    %v465 = vadd.f32 %v463, %v464
    %v466 = vrot.slane %v465, 1
    %v467 = vadd.f32 %v465, %v466
    %v468 = vmul.f32 %v467, %v167
    %v469 = vmul.f32 %v468, %v386
    %v470 = vlaneseq
    %v471 = vshrl.u32 %v470, 7
    %v472 = vsub.s32 3, %v471
    %v473 = vrot.slane %v469, %v472
    %v474 = vsub.f32 %v453, %v473
    %v475 = vsub.f32 %v456, %v473
    %v476 = vmul.f32 %v474, %v474
    %v477 = vmul.f32 %v475, %v475
    %v478 = vsel %vm72, %v476, 0.0
    %v479 = vsel %vm72, %v477, 0.0
    %v480 = vadd.f32 %v478, %v479
    %v481 = vrot.slane %v480, 4
    %v482 = vadd.f32 %v480, %v481
    %v483 = vrot.slane %v482, 2
    %v484 = vadd.f32 %v482, %v483
    %v485 = vrot.slane %v484, 1
    %v486 = vadd.f32 %v484, %v485
    %v487 = vmul.f32 %v486, %v167
    %v488 = vadd.f32 %v487, 1e-05
    %v489 = vrsqrt.pop %v488
    %v490 = vmul.f32 %v386, %v489
    %v491 = vlaneseq
    %v492 = vshrl.u32 %v491, 7
    %v493 = vsub.s32 1, %v492
    %v494 = vrot.slane %v490, %v493
    %v495 = vmul.f32 %v474, %v494
    %v496 = vmul.f32 %v475, %v494
    %v497 = vlaneseq
    %v498 = vshrl.u32 %v497, 7
    %v499 = vsub.s32 2, %v498
    %v500 = vrot.slane %v386, %v499
    %v501 = vadd.f32 %v495, %v500
    %v502 = vadd.f32 %v496, %v500
    %vm503 = vcmp.gt.f32.partialorder %v501, 0.0
    %vm504 = vcmp.gt.f32.partialorder %v502, 0.0
    %v505 = vmul.f32 %v501, 0.1
    %v506 = vmul.f32 %v502, 0.1
    %v507 = vsel %vm503, %v501, %v505
    %v508 = vsel %vm504, %v502, %v506
    %v509 = vrot.slane %v507, 7
    %v510 = vrot.slane %v508, 7
    %v511 = vsel %vm55, %v509, %v510
    %v512 = vsel %vm55, %v510, %v509
    %v513 = vsel %vm60, 0.0, %v512
    %v514 = vsel %vm61, 0.0, %v511
    %517 = vrot.lane.b32.xlu0 %v507, 32
    %v518 = vpop.permute.xlu0 %517
    %519 = vrot.lane.b32.xlu0 %v508, 32
    %v520 = vpop.permute.xlu0 %519
    %v523 = vsel %vm72, %v513, %v518
    %v524 = vsel %vm72, %v514, %v520
    %v525 = vpack.c.bf16 %v524, %v523
    %s526 = scalar_lea.vmem %s1, 96
    %v527 = vld [vmem:[%s526] sm:$0xf]
    %v528 = vld [vmem:[%s526 + $0x4] sm:$0xf]
    %v529 = vld [vmem:[%s526 + $0x8] sm:$0xf]
    %v530 = vld [vmem:[%s526 + $0xc] sm:$0xf]
    %v531 = vld [vmem:[%s526 + $0x10] sm:$0xf]
    %v532 = vld [vmem:[%s526 + $0x14] sm:$0xf]
    %v533 = vld [vmem:[%s526 + $0x18] sm:$0xf]
    %v534 = vld [vmem:[%s526 + $0x1c] sm:$0xf]
    %s535 = scalar_lea.vmem %s2, 24
    %v536 = vld [vmem:[%s535] sm:$0xff]
    %v537 = vlaneseq
    %v538 = vshrl.u32 %v537, 7
    %v539 = vsub.s32 0, %v538
    %v540 = vrot.slane %v536, %v539
    %v549 = vunpack.c.l.b16 %v527
    %v550 = vunpack.c.l.b16 %v528
    %v551 = vunpack.c.l.b16 %v529
    %v552 = vunpack.c.l.b16 %v530
    %v553 = vunpack.c.l.b16 %v531
    %v554 = vunpack.c.l.b16 %v532
    %v555 = vunpack.c.l.b16 %v533
    %v556 = vunpack.c.l.b16 %v534
    %v557 = vpack.c.b16 %v550, %v549
    %v558 = vpack.c.b16 %v552, %v551
    %v559 = vpack.c.b16 %v554, %v553
    %v560 = vpack.c.b16 %v556, %v555
    %v566 = vsel %vm113, %v525, 0
    %568 = vmatprep.subr.bf16.mxu0 0
    %569 = vmatpush1.bf16.msra.mxu0 0
    %570 = vmatprep.subr.bf16.mxu0 0
    %571 = vmatpush1.bf16.msra.mxu0 0
    %572 = vmatprep.subr.bf16.mxu0 0
    %573 = vmatpush1.bf16.msra.mxu0 0
    %574 = vmatprep.subr.bf16.mxu0 0
    %575 = vmatpush1.bf16.msra.mxu0 0
    %576 = vmatprep.subr.bf16.mxu0 0
    %577 = vmatpush1.bf16.msra.mxu0 %v560
    %578 = vmatprep.subr.bf16.mxu0 0
    %579 = vmatpush1.bf16.msra.mxu0 %v559
    %580 = vmatprep.subr.bf16.mxu0 0
    %581 = vmatpush1.bf16.msra.mxu0 %v558
    %582 = vmatprep.subr.bf16.mxu0 0
    %583 = vmatpush1.bf16.msra.mxu0 %v557
    %584 = vmatprep.subr.bf16.mxu0 0
    %585 = vmatpush2.bf16.msra.mxu0 0
    %586 = vmatprep.subr.bf16.mxu0 0
    %587 = vmatpush2.bf16.msra.mxu0 0
    %588 = vmatprep.subr.bf16.mxu0 0
    %589 = vmatpush2.bf16.msra.mxu0 0
    %590 = vmatprep.subr.bf16.mxu0 0
    %591 = vmatpush2.bf16.msra.mxu0 0
    %592 = vmatprep.subr.bf16.mxu0 0
    %593 = vmatpush2.bf16.msra.mxu0 0
    %594 = vmatprep.subr.bf16.mxu0 0
    %595 = vmatpush2.bf16.msra.mxu0 0
    %596 = vmatprep.subr.bf16.mxu0 0
    %597 = vmatpush2.bf16.msra.mxu0 0
    %598 = vmatprep.subr.bf16.mxu0 0
    %599 = vmatpush2.bf16.msra.mxu0 0
    %600 = vmatprep.mubr.bf16.mxu0 0
    %601 = vmatmul.mubr.bf16.gmra.mxu0 %v566
    %v602 = vpop.f32.mrf.mxu0
    %v603 = vadd.f32 %v540, %v602
    %v604 = vpop.f32.mrf.mxu0
    %v605 = vpop.f32.mrf.mxu0
    %v606 = vadd.f32 %v540, %v605
    %v607 = vpop.f32.mrf.mxu0
    %608 = vdwg.mxu0
    %v609 = vsel %vm72, %v603, 0.0
    %v610 = vsel %vm72, %v606, 0.0
    %v611 = vadd.f32 %v609, %v610
    %v612 = vrot.slane %v611, 4
    %v613 = vadd.f32 %v611, %v612
    %v614 = vrot.slane %v613, 2
    %v615 = vadd.f32 %v613, %v614
    %v616 = vrot.slane %v615, 1
    %v617 = vadd.f32 %v615, %v616
    %v618 = vmul.f32 %v617, %v167
    %v619 = vmul.f32 %v618, %v536
    %v620 = vlaneseq
    %v621 = vshrl.u32 %v620, 7
    %v622 = vsub.s32 3, %v621
    %v623 = vrot.slane %v619, %v622
    %v624 = vsub.f32 %v603, %v623
    %v625 = vsub.f32 %v606, %v623
    %v626 = vmul.f32 %v624, %v624
    %v627 = vmul.f32 %v625, %v625
    %v628 = vsel %vm72, %v626, 0.0
    %v629 = vsel %vm72, %v627, 0.0
    %v630 = vadd.f32 %v628, %v629
    %v631 = vrot.slane %v630, 4
    %v632 = vadd.f32 %v630, %v631
    %v633 = vrot.slane %v632, 2
    %v634 = vadd.f32 %v632, %v633
    %v635 = vrot.slane %v634, 1
    %v636 = vadd.f32 %v634, %v635
    %v637 = vmul.f32 %v636, %v167
    %v638 = vadd.f32 %v637, 1e-05
    %v639 = vrsqrt.pop %v638
    %v640 = vmul.f32 %v536, %v639
    %v641 = vlaneseq
    %v642 = vshrl.u32 %v641, 7
    %v643 = vsub.s32 1, %v642
    %v644 = vrot.slane %v640, %v643
    %v645 = vmul.f32 %v624, %v644
    %v646 = vmul.f32 %v625, %v644
    %v647 = vlaneseq
    %v648 = vshrl.u32 %v647, 7
    %v649 = vsub.s32 2, %v648
    %v650 = vrot.slane %v536, %v649
    %v651 = vadd.f32 %v645, %v650
    %v652 = vadd.f32 %v646, %v650
    %v653 = vadd.f32 %v22, %v651
    %v654 = vadd.f32 %v23, %v652
    %v655 = vmax.f32 %v653, 0.0
    %v656 = vmax.f32 %v654, 0.0
    %v657 = vsel %vm72, %v655, 0.0
    %v658 = vsel %vm72, %v656, 0.0
    %v659 = vadd.f32 %v657, %v658
    %v660 = vrot.slane %v659, 4
    %v661 = vadd.f32 %v659, %v660
    %v662 = vrot.slane %v661, 2
    %v663 = vadd.f32 %v661, %v662
    %v664 = vrot.slane %v663, 1
    %v665 = vadd.f32 %v663, %v664
    %v666 = vmul.f32 %v665, %v167
    %v667 = vpack.c.bf16 %v666, %v666
    %v668 = vld [vmem:[%s3] sm:$0xf]
    %v669 = vld [vmem:[%s3 + $0x4] sm:$0xf]
    %v670 = vld [vmem:[%s3 + $0x8] sm:$0xf]
    %v671 = vld [vmem:[%s3 + $0xc] sm:$0xf]
    %v672 = vld [vmem:[%s4] sm:$0x1]
    %v677 = vunpack.c.l.b16 %v668
    %v678 = vunpack.c.l.b16 %v669
    %v679 = vunpack.c.l.b16 %v670
    %v680 = vunpack.c.l.b16 %v671
    %v681 = vpack.c.b16 %v678, %v677
    %v682 = vpack.c.b16 %v680, %v679
    %v686 = vsel %vm72, %v667, 0
    %688 = vmatprep.subr.bf16.mxu0 0
    %689 = vmatpush1.bf16.msra.mxu0 0
    %690 = vmatprep.subr.bf16.mxu0 0
    %691 = vmatpush1.bf16.msra.mxu0 0
    %692 = vmatprep.subr.bf16.mxu0 0
    %693 = vmatpush1.bf16.msra.mxu0 0
    %694 = vmatprep.subr.bf16.mxu0 0
    %695 = vmatpush1.bf16.msra.mxu0 0
    %696 = vmatprep.subr.bf16.mxu0 0
    %697 = vmatpush1.bf16.msra.mxu0 0
    %698 = vmatprep.subr.bf16.mxu0 0
    %699 = vmatpush1.bf16.msra.mxu0 0
    %700 = vmatprep.subr.bf16.mxu0 0
    %701 = vmatpush1.bf16.msra.mxu0 %v682
    %702 = vmatprep.subr.bf16.mxu0 0
    %703 = vmatpush1.bf16.msra.mxu0 %v681
    %704 = vmatprep.subr.bf16.mxu0 0
    %705 = vmatpush2.bf16.msra.mxu0 0
    %706 = vmatprep.subr.bf16.mxu0 0
    %707 = vmatpush2.bf16.msra.mxu0 0
    %708 = vmatprep.subr.bf16.mxu0 0
    %709 = vmatpush2.bf16.msra.mxu0 0
    %710 = vmatprep.subr.bf16.mxu0 0
    %711 = vmatpush2.bf16.msra.mxu0 0
    %712 = vmatprep.subr.bf16.mxu0 0
    %713 = vmatpush2.bf16.msra.mxu0 0
    %714 = vmatprep.subr.bf16.mxu0 0
    %715 = vmatpush2.bf16.msra.mxu0 0
    %716 = vmatprep.subr.bf16.mxu0 0
    %717 = vmatpush2.bf16.msra.mxu0 0
    %718 = vmatprep.subr.bf16.mxu0 0
    %719 = vmatpush2.bf16.msra.mxu0 0
    %720 = vmatprep.mubr.bf16.mxu0 0
    %721 = vmatmul.mubr.bf16.gmra.mxu0 %v686
    %v722 = vpop.f32.mrf.mxu0
    %v723 = vadd.f32 %v672, %v722
    %v724 = vpop.f32.mrf.mxu0
    %v725 = vpop.f32.mrf.mxu0
    %v726 = vpop.f32.mrf.mxu0
    %727 = vdwg.mxu0
    %v728 = vmax.f32 %v723, 0.0
    %v729 = vand.u32 2147483647, %v723
    %v730 = vsub.f32 0.0, %v729
    %v731 = vmul.f32 %v730, 1.442695
    %v732 = vpow.pop %v731
    %v733 = vadd.f32 %v732, 1.0
    %v734 = vlog2.pop %v733
    %v735 = vmul.f32 %v734, 0.6931472
    %v736 = vmul.f32 -0.5, %v732
    %v737 = vadd.f32 %v736, 1.0
    %v738 = vmul.f32 %v737, %v732
    %v739 = vand.u32 2147483647, %v732
    %vm740 = vcmp.lt.f32.partialorder %v739, 0.0004427343
    %v741 = vsel %vm740, %v738, %v735
    %v742 = vadd.f32 %v728, %v741
    %vm743 = vcmask 57344
    %744 = vst.msk [vmem:[#allocation2] sm:$0x1] %vm743, %v742
    // Predicated region
    $region22: #{gcn1_forward.1} parent=1 // pred_check
      _
    $region23: #{gcn1_forward.1} parent=1 // pred_check_branch
      %746 = sbr.rel (0) target = $region25
    $region24: #{gcn1_forward.1} parent=1 // pred_region
      %s748 = ssub.s32 16, 16
      %749 = vsyncadd [#allocation3], %s748
      %s751 = sshll.u32 [#allocation2], 4
      %s752 = int_to_ptr.vmem [resolvable:$true] %s751
      %754 = dma.vmem_to_hbm [thread:$0]  %s752, 16, %s5, [#allocation3]
    $region25: #{gcn1_forward.1} parent=1 // pred_fallthru
      _
    // Predicated region
    $region26: #{gcn1_forward.1} parent=1 // pred_check
      _
    $region27: #{gcn1_forward.1} parent=1 // pred_check_branch
      %756 = sbr.rel (0) target = $region29
    $region28: #{gcn1_forward.1} parent=1 // pred_region
      %757 = dma.done [#allocation3], 16
    $region29: #{gcn1_forward.1} parent=1 // pred_fallthru
      _
    %758 = vsyncpa [#allocation3], 1

</llo_original>
